<compile_context>
chip_gen: v5e
topology: v5e:2x2
jax: 0.10.0
libtpu: 0.0.40
codegen_flags: <defaults>
</compile_context>

<pallas_src>
import functools

import jax
import jax.numpy as jnp
from jax import lax
from jax.experimental import pallas as pl
from jax.experimental.pallas import tpu as pltpu


_N_DMA_SLOTS = 8            # outstanding row DMAs in the HBM-gather path
_ONE_HOT_MAX_ROWS = 2048    # vocab cutoff for the one-hot MXU gather path


def _round_up(x: int, m: int) -> int:
    return ((x + m - 1) // m) * m


def _sublane_multiple(dtype) -> int:
    # 8 for 4-byte, 16 for 2-byte, 32 for 1-byte dtypes (sublane packing).
    return max(8, 32 // jnp.dtype(dtype).itemsize)


_VMEM_CAP_CACHE = None


def _vmem_capacity_bytes() -> int:
    """Per-TensorCore VMEM capacity; conservative 64 MiB (v7x) if unknown."""
    global _VMEM_CAP_CACHE
    if _VMEM_CAP_CACHE is None:
        cap = 64 << 20
        try:
            info = pltpu.get_tpu_info()
            got = int(getattr(info, "vmem_capacity_bytes", 0) or 0)
            if got > 0:
                cap = got
        except Exception:
            pass
        _VMEM_CAP_CACHE = cap
    return _VMEM_CAP_CACHE


def _gather_onehot_kernel(idx_ref, table_ref, out_ref):
    """Gather `block` rows of the VMEM-resident table via a one-hot MXU matmul.

      idx_ref:   (block, 1) int32  -- this chunk's row ids (VMEM, pipelined)
      table_ref: (V, d_pad)        -- whole table, VMEM resident
      out_ref:   (block, d_pad)    -- output tile
    """
    v = table_ref.shape[0]
    block = out_ref.shape[0]
    idx_col = idx_ref[...]                                    # (block, 1)
    cols = lax.broadcasted_iota(jnp.int32, (block, v), 1)     # cols[b, r] = r
    one_hot = (cols == idx_col).astype(table_ref.dtype)       # (block, V)
    acc = jnp.dot(one_hot, table_ref[...],
                  preferred_element_type=jnp.float32)         # exact: 1 nonzero/row
    out_ref[...] = acc.astype(out_ref.dtype)


def _gather_hbm_kernel(idx_ref, table_hbm, out_ref, sems):
    """DMA-gather `block` rows straight from the HBM-resident table into the
    output block, keeping sems.shape[0] row copies in flight.

      idx_ref:   (n_pad,) int32 in SMEM (scalar prefetch)
      table_hbm: (V, d_pad) table left in HBM (memory_space=pl.ANY)
      out_ref:   (block, d_pad) VMEM output tile (DMA destination)
      sems:      (K,) DMA semaphores
    """
    block = out_ref.shape[0]
    n_slots = sems.shape[0]
    base = pl.program_id(0) * block

    def row_copy(r):
        row = idx_ref[base + r]            # clamped in the wrapper: always < V
        return pltpu.make_async_copy(table_hbm.at[row], out_ref.at[r],
                                     sems.at[r % n_slots])

    # Prime up to K outstanding row copies.
    for r in range(min(n_slots, block)):
        row_copy(r).start()

    def body(r, carry):
        row_copy(r).wait()                 # row r has landed in out_ref[r]

        @pl.when(r + n_slots < block)
        def _():
            row_copy(r + n_slots).start()  # keep K copies in flight

        return carry

    lax.fori_loop(0, block, body, 0)


@functools.partial(jax.jit, static_argnames=("out_dim", "mode"))
def embedding_lookup(table, flat_indices, *, out_dim=None, mode="auto"):
    """Gather rows of `table` ([V, D]) at `flat_indices` ([N]) -> [N, out_dim].

    Out-of-range indices are clamped into [0, V) (torch would raise); the clamp
    also guards the in-kernel DMA / dynamic loads, which are unchecked on TPU.
    """
    v, d = table.shape
    n = int(flat_indices.shape[0])
    out_dim = d if out_dim is None else out_dim
    itemsize = jnp.dtype(table.dtype).itemsize

    d_pad = _round_up(d, 128)                # lane-dense rows / stores
    sub = _sublane_multiple(table.dtype)     # sublane packing multiple
    n1 = max(n, 1)
    vmem_cap = _vmem_capacity_bytes()
    table_bytes = v * d_pad * itemsize

    if mode == "auto":
        # VMEM-resident one-hot gather only when (a) the table comfortably fits
        # the per-core VMEM budget, (b) the one-hot is MXU sized, and (c)
        # streaming V*D bytes is not much worse than the N*D bytes we need.
        resident_ok = table_bytes <= min(vmem_cap // 4, 40 << 20)
        onehot_ok = v <= _ONE_HOT_MAX_ROWS
        traffic_ok = table_bytes <= max(8 * n1 * d_pad * itemsize, 4 << 20)
        mode = "vmem" if (resident_ok and onehot_ok and traffic_ok) else "hbm"
    if mode not in ("vmem", "hbm"):
        raise ValueError(f"unknown lookup mode: {mode}")

    # Chunk size: as large as reasonable (amortize grid-step overhead), rounded
    # to the sublane packing multiple, capped by VMEM footprint.
    v_lanes = _round_up(v, 128)
    max_block_out = max(sub, ((4 << 20) // (d_pad * itemsize)) // sub * sub)
    block = min(1024, _round_up(n1, sub), max_block_out)
    if mode == "vmem":
        max_block_oh = max(sub, ((4 << 20) // (v_lanes * 4)) // sub * sub)
        block = min(block, max_block_oh)
    block = max(sub, (block // sub) * sub)
    n_pad = _round_up(n1, block)
    num_chunks = n_pad // block
    out_block_bytes = block * d_pad * itemsize

    idx = jnp.clip(flat_indices.astype(jnp.int32), 0, v - 1).reshape(-1)
    if n_pad != n:
        idx = jnp.pad(idx, (0, n_pad - n))   # padded tail gathers row 0; sliced off

    # Lane padding: a no-op when the caller (UserItemEmbeds) padded once at
    # init; only direct callers with D % 128 != 0 pay a per-call table copy.
    table_p = table if d_pad == d else jnp.pad(table, ((0, 0), (0, d_pad - d)))

    if mode == "vmem":
        idx_col = idx.reshape(n_pad, 1)
        need = (table_bytes + 4 * out_block_bytes
                + 2 * block * v_lanes * itemsize + 2 * block * 128 * 4
                + (4 << 20))
        vmem_limit = int(min(max(need, 16 << 20), int(vmem_cap * 0.9)))
        grid_spec = pltpu.PrefetchScalarGridSpec(
            num_scalar_prefetch=0,
            grid=(num_chunks,),
            in_specs=[
                # Per-chunk indices in VMEM (vectorized use, no SMEM pressure).
                pl.BlockSpec((block, 1), lambda i: (i, 0)),
                # Whole table resident in VMEM (single copy, no per-step DMA).
                pl.BlockSpec(memory_space=pltpu.MemorySpace.VMEM),
            ],
            out_specs=pl.BlockSpec((block, d_pad), lambda i: (i, 0)),
        )
        out = pl.pallas_call(
            _gather_onehot_kernel,
            grid_spec=grid_spec,
            out_shape=jax.ShapeDtypeStruct((n_pad, d_pad), table.dtype),
            compiler_params=pltpu.CompilerParams(
                # "arbitrary": don't shard across TensorCores (v7x would
                # duplicate the resident table copy on both cores).
                dimension_semantics=("arbitrary",),
                vmem_limit_bytes=vmem_limit,
            ),
        )(idx_col, table_p)
    else:
        need = 4 * out_block_bytes + (4 << 20)
        vmem_limit = int(min(max(need, 16 << 20), int(vmem_cap * 0.9)))
        grid_spec = pltpu.PrefetchScalarGridSpec(
            num_scalar_prefetch=1,           # indices -> SMEM (DMA addressing)
            grid=(num_chunks,),
            in_specs=[
                # Table stays in HBM; only the requested rows are moved.
                pl.BlockSpec(memory_space=pl.ANY),
            ],
            out_specs=pl.BlockSpec((block, d_pad), lambda i, idx_ref: (i, 0)),
            scratch_shapes=[pltpu.SemaphoreType.DMA((_N_DMA_SLOTS,))],
        )
        out = pl.pallas_call(
            _gather_hbm_kernel,
            grid_spec=grid_spec,
            out_shape=jax.ShapeDtypeStruct((n_pad, d_pad), table.dtype),
            compiler_params=pltpu.CompilerParams(
                dimension_semantics=("parallel",),   # independent chunks
                vmem_limit_bytes=vmem_limit,
            ),
        )(idx, table_p)

    return out[:n, :out_dim]


def lookup(table, indices, mode="auto"):
    """nn.Embedding-style lookup: indices [...] -> [..., D]."""
    indices = jnp.asarray(indices)
    d = int(table.shape[1])
    out = embedding_lookup(table, indices.reshape(-1), out_dim=d, mode=mode)
    return out.reshape(indices.shape + (d,))


class UserItemEmbeds:
    """JAX/Pallas port of the PyTorch UserItemEmbeds module.

    Forward semantics match the torch module:
      is_user=True :  (user_embeds(nodes), item_embeds(neighbors), degrees)
      is_user=False:  (item_embeds(nodes), user_embeds(neighbors), degrees)
    (neighbor/degree outputs only when with_neighbor and both are given).

    TODO(synk): torch.nn.Embedding raises on out-of-range ids; here they are
    clamped into range (required anyway to guard the unchecked TPU gather).
    """

    def __init__(self, user_table, item_table, lookup_mode="auto"):
        assert user_table.shape[1] == item_table.shape[1]
        self.num_users = int(user_table.shape[0])
        self.num_items = int(item_table.shape[0])
        self.embed_dim = int(user_table.shape[1])
        self.lookup_mode = lookup_mode
        # Fused table: rows [0, num_users) are user rows, the rest item rows,
        # lane-padded ONCE here (not per forward call).  Node + neighbor
        # lookups then share a single pallas_call.
        d_pad = _round_up(self.embed_dim, 128)
        combined = jnp.concatenate([user_table, item_table], axis=0)
        if d_pad != self.embed_dim:
            combined = jnp.pad(combined,
                               ((0, 0), (0, d_pad - self.embed_dim)))
        self.combined_table = combined        # [num_users + num_items, d_pad]

    def _offsets(self, is_user: bool):
        if is_user:
            return 0, self.num_users, self.num_users, self.num_items
        return self.num_users, self.num_items, 0, self.num_users

    def __call__(self, nodes, neighbors=None, degrees=None,
                 is_user=True, with_neighbor=True):
        nodes = jnp.asarray(nodes)
        node_off, node_vocab, nb_off, nb_vocab = self._offsets(is_user)
        d = self.embed_dim

        node_idx = (jnp.clip(nodes.astype(jnp.int32), 0, node_vocab - 1)
                    + node_off)

        if with_neighbor and neighbors is not None and degrees is not None:
            neighbors = jnp.asarray(neighbors)
            nb_idx = (jnp.clip(neighbors.astype(jnp.int32), 0, nb_vocab - 1)
                      + nb_off)
            n_nodes = node_idx.size
            # One fused gather over the combined table for nodes + neighbors.
            flat = jnp.concatenate([node_idx.reshape(-1), nb_idx.reshape(-1)])
            out = embedding_lookup(self.combined_table, flat,
                                   out_dim=d, mode=self.lookup_mode)
            node_emb = out[:n_nodes].reshape(nodes.shape + (d,))
            nb_emb = out[n_nodes:].reshape(neighbors.shape + (d,))
            return (node_emb, nb_emb, degrees)

        out = embedding_lookup(self.combined_table, node_idx.reshape(-1),
                               out_dim=d, mode=self.lookup_mode)
        return (out.reshape(nodes.shape + (d,)),)


if __name__ == "__main__":
    key = jax.random.PRNGKey(0)
    k_user, k_item, k_nodes, k_neigh, k_deg, k_big = jax.random.split(key, 6)

    num_users, num_items, embed_dim = 64, 96, 128
    batch, n_neighbors = 8, 4

    # Deterministic synthetic "parameters" (embedding tables).
    user_table = jax.random.normal(k_user, (num_users, embed_dim), jnp.float32)
    item_table = jax.random.normal(k_item, (num_items, embed_dim), jnp.float32)

    nodes = jax.random.randint(k_nodes, (batch,), 0, num_users, jnp.int32)
    neighbors = jax.random.randint(
        k_neigh, (batch, n_neighbors), 0, num_items, jnp.int32)
    degrees = jax.random.uniform(k_deg, (batch,), jnp.float32)

    # Auto mode: small vocab -> VMEM-resident one-hot MXU gather path.
    module = UserItemEmbeds(user_table, item_table)
    u_emb, nb_emb, deg_out = module(nodes, neighbors, degrees,
                                    is_user=True, with_neighbor=True)
    (i_emb,) = module(nodes % num_items, is_user=False, with_neighbor=False)
    jax.block_until_ready((u_emb, nb_emb, deg_out, i_emb))

    # Forced HBM-resident DMA row-gather path (the N << V regime).
    module_hbm = UserItemEmbeds(user_table, item_table, lookup_mode="hbm")
    u_emb_h, nb_emb_h, _ = module_hbm(nodes, neighbors, degrees,
                                      is_user=True, with_neighbor=True)
    jax.block_until_ready((u_emb_h, nb_emb_h))

    # Larger lookup exercising multiple 1024-row chunks + padded tail on both
    # paths (2500 indices -> block 1024, grid 3).
    big_idx = jax.random.randint(k_big, (2500,), 0, num_items, jnp.int32)
    big_vmem = lookup(item_table, big_idx, mode="vmem")
    big_hbm = lookup(item_table, big_idx, mode="hbm")
    jax.block_until_ready((big_vmem, big_hbm))

    # Correctness checks against plain-JAX gather references.
    assert u_emb.shape == (batch, embed_dim)
    assert nb_emb.shape == (batch, n_neighbors, embed_dim)
    assert jnp.allclose(u_emb, user_table[nodes])
    assert jnp.allclose(nb_emb, item_table[neighbors])
    assert jnp.allclose(i_emb, item_table[nodes % num_items])
    assert jnp.allclose(deg_out, degrees)
    assert jnp.allclose(u_emb_h, user_table[nodes])
    assert jnp.allclose(nb_emb_h, item_table[neighbors])
    big_ref = item_table[big_idx]
    assert jnp.allclose(big_vmem, big_ref)
    assert jnp.allclose(big_hbm, big_ref)

    print("KERNEL_OK")
</pallas_src>

<mosaic_0001>
module attributes {stable_mosaic.version = 11 : i64} {
  func.func @_gather_onehot_kernel(%arg0: i32, %arg1: memref<40x1xi32, #tpu.memory_space<vmem>>, %arg2: memref<160x128xf32, #tpu.memory_space<vmem>>, %arg3: memref<40x128xf32, #tpu.memory_space<vmem>>) attributes {dimension_semantics = [#tpu.dimension_semantics<arbitrary>], iteration_bounds = array<i64: 1>, scalar_prefetch = 0 : i64, scratch_operands = 0 : i64, tpu.core_type = #tpu.core_type<tc>, window_params = [{transform_indices = @transform_0, window_bounds = array<i64: 40, 1>}, {pipeline_mode = #tpu.pipeline_mode<synchronous>, transform_indices = @transform_1, window_bounds = array<i64: 160, 128>}, {transform_indices = @transform_2, window_bounds = array<i64: 40, 128>}]} {
    %c0 = arith.constant 0 : index
    %c0_0 = arith.constant 0 : index
    %0 = vector.load %arg1[%c0, %c0_0] : memref<40x1xi32, #tpu.memory_space<vmem>>, vector<40x1xi32>
    %1 = tpu.iota {dimensions = array<i32: 1>} : vector<40x160xi32>
    %2 = vector.broadcast %0 : vector<40x1xi32> to vector<40x160xi32>
    %3 = arith.cmpi eq, %1, %2 : vector<40x160xi32>
    %4 = arith.extui %3 : vector<40x160xi1> to vector<40x160xi32>
    %5 = arith.sitofp %4 : vector<40x160xi32> to vector<40x160xf32>
    %c0_1 = arith.constant 0 : index
    %c0_2 = arith.constant 0 : index
    %6 = vector.load %arg2[%c0_1, %c0_2] : memref<160x128xf32, #tpu.memory_space<vmem>>, vector<160x128xf32>
    %cst = arith.constant dense<0.000000e+00> : vector<40x128xf32>
    %7 = tpu.matmul %5, %6, %cst {dimension_numbers = #tpu.dot_dimension_numbers<[1], [0], [0], [1], [0, 0, 1, 1], [], []>} : vector<40x160xf32>, vector<160x128xf32>, vector<40x128xf32> -> vector<40x128xf32>
    %c0_3 = arith.constant 0 : index
    %c0_4 = arith.constant 0 : index
    %8 = vector.load %arg3[%c0_3, %c0_4] : memref<40x128xf32, #tpu.memory_space<vmem>>, vector<40x128xf32>
    tpu.vector_store %arg3[%c0_3, %c0_4], %7 {strides = array<i32>} : memref<40x128xf32, #tpu.memory_space<vmem>>, vector<40x128xf32>,
    return
  }
  func.func @transform_0(%arg0: i32) -> (i32, i32) {
    %c0_i32 = arith.constant 0 : i32
    %c0_i32_0 = arith.constant 0 : i32
    return %arg0, %c0_i32 : i32, i32
  }
  func.func @transform_1(%arg0: i32) -> (i32, i32) {
    %c0_i32 = arith.constant 0 : i32
    %c0_i32_0 = arith.constant 0 : i32
    %c0_i32_1 = arith.constant 0 : i32
    return %c0_i32, %c0_i32_0 : i32, i32
  }
  func.func @transform_2(%arg0: i32) -> (i32, i32) {
    %c0_i32 = arith.constant 0 : i32
    %c0_i32_0 = arith.constant 0 : i32
    return %arg0, %c0_i32 : i32, i32
  }
}

</mosaic_0001>

<llo_original>
// kernel: embedding_lookup.1
$region0: #{embedding_lookup.1}
  #allocation0 [shape = 'u32[]', space=smem, size = 0x4, offset = 0x4, fixed_abs, tag = 'smem constant byte address 0x4 - core index']
  #allocation1 [shape = 'u32[72,128]{1,0:T(1,128)}', space=vmem, size = 0x9000, scoped, tag = 'internal scratch']
  %s0 = inlined_call_operand.vmem [shape: s32[40,1], index: 0, kind: input, shape index: {}]
  %s1 = inlined_call_operand.hbm [shape: f32[160,128], index: 1, kind: input, shape index: {}]
  %s2 = inlined_call_operand.hbm [shape: f32[40,128], index: 2, kind: output, shape index: {}]
  %s3 = sld [smem:[#allocation0]]
  $region22: #{embedding_lookup.1} parent=0
    _
  %s5 = ssub.s32 1, %s3
  %s6 = scalar_select 0, %s5, %s3
  $region1: #{embedding_lookup.1} parent=0
    #allocation2 [shape = 'u8[81920]{0}', space=vmem, size = 0x14000, scoped, tag = 'input window, operand 1, single buffered']
    #allocation3 [shape = 's32[1]{0}', space=sflag, size = 0x4, scoped, tag = 'scoped memory for embedding_lookup.1']
    #allocation4 [shape = 's32[1]{0}', space=sflag, size = 0x4, scoped, tag = 'scoped memory for embedding_lookup.1']
    #allocation5 [shape = 'u8[20480]{0}', space=vmem, size = 0x5000, scoped, tag = 'output window, operand 0, single buffered']
    %7 = vsyncpa [#allocation3], 0
    %8 = vsyncpa [#allocation4], 0
    // Predicated region
    $region2: #{embedding_lookup.1} parent=1 // pred_check
      _
    $region3: #{embedding_lookup.1} parent=1 // pred_check_branch
      %10 = sbr.rel (0) target = $region5
    $region4: #{embedding_lookup.1} parent=1 // pred_region
      _
    $region5: #{embedding_lookup.1} parent=1 // pred_fallthru
      _
    // Predicated region
    $region6: #{embedding_lookup.1} parent=1 // pred_check
      _
    $region7: #{embedding_lookup.1} parent=1 // pred_check_branch
      %12 = sbr.rel (0) target = $region9
    $region8: #{embedding_lookup.1} parent=1 // pred_region
      %14 = vsyncadd [#allocation3], 0
      %s15 = sshll.u32 %s1, 4
      %s16 = int_to_ptr.hbm [resolvable:$true] %s15
      %s17 = sshll.u32 [#allocation2], 4
      %s18 = int_to_ptr.vmem [resolvable:$true] %s17
      %23 = dma.hbm_to_vmem [thread:$0]  %s16, 2560, %s18, [#allocation3], 128, 128, 8
    $region9: #{embedding_lookup.1} parent=1 // pred_fallthru
      _
    // Predicated region
    $region10: #{embedding_lookup.1} parent=1 // pred_check
      _
    $region11: #{embedding_lookup.1} parent=1 // pred_check_branch
      %25 = sbr.rel (0) target = $region13
    $region12: #{embedding_lookup.1} parent=1 // pred_region
      %27 = dma.done [#allocation3], 2560
    $region13: #{embedding_lookup.1} parent=1 // pred_fallthru
      _
    %v28 = vld [vmem:[%s0] sm:$0xff]
    %v29 = vld [vmem:[%s0 + $0x8] sm:$0xff]
    %v30 = vld [vmem:[%s0 + $0x10] sm:$0xff]
    %v31 = vld [vmem:[%s0 + $0x18] sm:$0xff]
    %v32 = vld [vmem:[%s0 + $0x20] sm:$0xff]
    %v33 = vlaneseq
    %v34 = vand.u32 %v33, 127
    %v35 = vadd.s32 %v34, 128
    %36 = vset.pattern.permute.xlu0 0
    %37 = vperm.xlu0 %36, %v28
    %v38 = vpop.permute.xlu0 %37
    %39 = vset.pattern.permute.xlu0 0
    %40 = vperm.xlu0 %39, %v29
    %v41 = vpop.permute.xlu0 %40
    %42 = vset.pattern.permute.xlu0 0
    %43 = vperm.xlu0 %42, %v30
    %v44 = vpop.permute.xlu0 %43
    %45 = vset.pattern.permute.xlu0 0
    %46 = vperm.xlu0 %45, %v31
    %v47 = vpop.permute.xlu0 %46
    %48 = vset.pattern.permute.xlu0 0
    %49 = vperm.xlu0 %48, %v32
    %v50 = vpop.permute.xlu0 %49
    %vm51 = vcmp.eq.s32.totalorder %v34, %v38
    %vm52 = vcmp.eq.s32.totalorder %v35, %v38
    %vm53 = vcmp.eq.s32.totalorder %v34, %v41
    %vm54 = vcmp.eq.s32.totalorder %v35, %v41
    %vm55 = vcmp.eq.s32.totalorder %v34, %v44
    %vm56 = vcmp.eq.s32.totalorder %v35, %v44
    %vm57 = vcmp.eq.s32.totalorder %v34, %v47
    %vm58 = vcmp.eq.s32.totalorder %v35, %v47
    %vm59 = vcmp.eq.s32.totalorder %v34, %v50
    %vm60 = vcmp.eq.s32.totalorder %v35, %v50
    %v61 = vsel %vm51, 1, 0
    %v62 = vsel %vm52, 1, 0
    %v63 = vsel %vm53, 1, 0
    %v64 = vsel %vm54, 1, 0
    %v65 = vsel %vm55, 1, 0
    %v66 = vsel %vm56, 1, 0
    %v67 = vsel %vm57, 1, 0
    %v68 = vsel %vm58, 1, 0
    %v69 = vsel %vm59, 1, 0
    %v70 = vsel %vm60, 1, 0
    %v71 = vcvt.s32.f32 %v61
    %v72 = vcvt.s32.f32 %v62
    %v73 = vcvt.s32.f32 %v63
    %v74 = vcvt.s32.f32 %v64
    %v75 = vcvt.s32.f32 %v65
    %v76 = vcvt.s32.f32 %v66
    %v77 = vcvt.s32.f32 %v67
    %v78 = vcvt.s32.f32 %v68
    %v79 = vcvt.s32.f32 %v69
    %v80 = vcvt.s32.f32 %v70
    %v81 = vld [vmem:[#allocation2] sm:$0xff]
    %v82 = vld [vmem:[#allocation2 + $0x8] sm:$0xff]
    %v83 = vld [vmem:[#allocation2 + $0x10] sm:$0xff]
    %v84 = vld [vmem:[#allocation2 + $0x18] sm:$0xff]
    %v85 = vld [vmem:[#allocation2 + $0x20] sm:$0xff]
    %v86 = vld [vmem:[#allocation2 + $0x28] sm:$0xff]
    %v87 = vld [vmem:[#allocation2 + $0x30] sm:$0xff]
    %v88 = vld [vmem:[#allocation2 + $0x38] sm:$0xff]
    %v89 = vld [vmem:[#allocation2 + $0x40] sm:$0xff]
    %v90 = vld [vmem:[#allocation2 + $0x48] sm:$0xff]
    %v91 = vld [vmem:[#allocation2 + $0x50] sm:$0xff]
    %v92 = vld [vmem:[#allocation2 + $0x58] sm:$0xff]
    %v93 = vld [vmem:[#allocation2 + $0x60] sm:$0xff]
    %v94 = vld [vmem:[#allocation2 + $0x68] sm:$0xff]
    %v95 = vld [vmem:[#allocation2 + $0x70] sm:$0xff]
    %v96 = vld [vmem:[#allocation2 + $0x78] sm:$0xff]
    %v97 = vld [vmem:[#allocation2 + $0x80] sm:$0xff]
    %v98 = vld [vmem:[#allocation2 + $0x88] sm:$0xff]
    %v99 = vld [vmem:[#allocation2 + $0x90] sm:$0xff]
    %v100 = vld [vmem:[#allocation2 + $0x98] sm:$0xff]
    %vm101 = vcmask 261120
    %v103 = vsel %vm101, %v72, 0
    %v106 = vsel %vm101, %v74, 0
    %v109 = vsel %vm101, %v76, 0
    %v112 = vsel %vm101, %v78, 0
    %v115 = vsel %vm101, %v80, 0
    %117 = vmatpush.msra.mxu0 %v96
    %118 = vmatpush.msra.mxu0 %v95
    %119 = vmatpush.msra.mxu0 %v94
    %120 = vmatpush.msra.mxu0 %v93
    %121 = vmatpush.msra.mxu0 %v92
    %122 = vmatpush.msra.mxu0 %v91
    %123 = vmatpush.msra.mxu0 %v90
    %124 = vmatpush.msra.mxu0 %v89
    %125 = vmatpush.msra.mxu0 %v88
    %126 = vmatpush.msra.mxu0 %v87
    %127 = vmatpush.msra.mxu0 %v86
    %128 = vmatpush.msra.mxu0 %v85
    %129 = vmatpush.msra.mxu0 %v84
    %130 = vmatpush.msra.mxu0 %v83
    %131 = vmatpush.msra.mxu0 %v82
    %132 = vmatpush.msra.mxu0 %v81
    %133 = vmatmul.f32.gmra.mxu0 %v71
    %v134 = vpop.f32.mrf.mxu0
    %v135 = vadd.f32 0.0, %v134
    %136 = vmatmul.f32.gmra.mxu0 %v73
    %v137 = vpop.f32.mrf.mxu0
    %v138 = vadd.f32 0.0, %v137
    %139 = vmatmul.f32.gmra.mxu0 %v75
    %v140 = vpop.f32.mrf.mxu0
    %v141 = vadd.f32 0.0, %v140
    %142 = vmatmul.f32.gmra.mxu0 %v77
    %v143 = vpop.f32.mrf.mxu0
    %v144 = vadd.f32 0.0, %v143
    %145 = vmatmul.f32.gmra.mxu0 %v79
    %v146 = vpop.f32.mrf.mxu0
    %v147 = vadd.f32 0.0, %v146
    %148 = vdwg.mxu0
    %149 = vmatpush.msra.mxu0 0.0
    %150 = vmatpush.msra.mxu0 0.0
    %151 = vmatpush.msra.mxu0 0.0
    %152 = vmatpush.msra.mxu0 0.0
    %153 = vmatpush.msra.mxu0 0.0
    %154 = vmatpush.msra.mxu0 0.0
    %155 = vmatpush.msra.mxu0 0.0
    %156 = vmatpush.msra.mxu0 0.0
    %157 = vmatpush.msra.mxu0 0.0
    %158 = vmatpush.msra.mxu0 0.0
    %159 = vmatpush.msra.mxu0 0.0
    %160 = vmatpush.msra.mxu0 0.0
    %161 = vmatpush.msra.mxu0 %v100
    %162 = vmatpush.msra.mxu0 %v99
    %163 = vmatpush.msra.mxu0 %v98
    %164 = vmatpush.msra.mxu0 %v97
    %165 = vmatmul.f32.gmra.mxu0 %v103
    %v166 = vpop.f32.mrf.mxu0
    %v167 = vadd.f32 %v135, %v166
    %168 = vmatmul.f32.gmra.mxu0 %v106
    %v169 = vpop.f32.mrf.mxu0
    %v170 = vadd.f32 %v138, %v169
    %171 = vmatmul.f32.gmra.mxu0 %v109
    %v172 = vpop.f32.mrf.mxu0
    %v173 = vadd.f32 %v141, %v172
    %174 = vmatmul.f32.gmra.mxu0 %v112
    %v175 = vpop.f32.mrf.mxu0
    %v176 = vadd.f32 %v144, %v175
    %177 = vmatmul.f32.gmra.mxu0 %v115
    %v178 = vpop.f32.mrf.mxu0
    %v179 = vadd.f32 %v147, %v178
    %180 = vdwg.mxu0
    %181 = vst [vmem:[#allocation5] sm:$0xff] %v167
    %182 = vst [vmem:[#allocation5 + $0x8] sm:$0xff] %v170
    %183 = vst [vmem:[#allocation5 + $0x10] sm:$0xff] %v173
    %184 = vst [vmem:[#allocation5 + $0x18] sm:$0xff] %v176
    %185 = vst [vmem:[#allocation5 + $0x20] sm:$0xff] %v179
    // Predicated region
    $region14: #{embedding_lookup.1} parent=1 // pred_check
      _
    $region15: #{embedding_lookup.1} parent=1 // pred_check_branch
      %187 = sbr.rel (0) target = $region17
    $region16: #{embedding_lookup.1} parent=1 // pred_region
      %189 = vsyncadd [#allocation4], 0
      %s190 = sshll.u32 [#allocation5], 4
      %s191 = int_to_ptr.vmem [resolvable:$true] %s190
      %s192 = sshll.u32 %s2, 4
      %s193 = int_to_ptr.hbm [resolvable:$true] %s192
      %198 = dma.vmem_to_hbm [thread:$0]  %s191, 640, %s193, [#allocation4], 128, 128, 8
    $region17: #{embedding_lookup.1} parent=1 // pred_fallthru
      _
    // Predicated region
    $region18: #{embedding_lookup.1} parent=1 // pred_check
      _
    $region19: #{embedding_lookup.1} parent=1 // pred_check_branch
      %200 = sbr.rel (0) target = $region21
    $region20: #{embedding_lookup.1} parent=1 // pred_region
      %202 = dma.done [#allocation4], 640
    $region21: #{embedding_lookup.1} parent=1 // pred_fallthru
      _
    %203 = vsyncpa [#allocation3], 1
    %204 = vsyncpa [#allocation4], 1

</llo_original>
